<compile_context>
chip_gen: v5e
topology: v5e:2x2
jax: 0.10.0
libtpu: 0.0.40
codegen_flags: <defaults>
</compile_context>

<pallas_src>
import jax
import jax.numpy as jnp
from jax.experimental import pallas as pl
from jax.experimental.pallas import tpu as pltpu

_SUB = 8  # sublane granule: batch tile must be a multiple of this


def dme_kernel(x_ref, w1_ref, b1_ref, w2_ref, b2_ref, out_ref):
    # h = relu(x @ W1 + b1); y = h @ W2 + b2   (f32 in, f32 MXU accumulation)
    h = jnp.dot(x_ref[...], w1_ref[...], preferred_element_type=jnp.float32)
    h = jnp.maximum(h + b1_ref[...], 0.0)          # [1, H] broadcasts over rows
    y = jnp.dot(h, w2_ref[...], preferred_element_type=jnp.float32)
    out_ref[...] = (y + b2_ref[...]).astype(out_ref.dtype)


def _round_up(n, m):
    return pl.cdiv(n, m) * m


def dme_forward(x, w1, b1, w2, b2, *, block_b=2048):
    """Fused Pallas forward pass of DMEModel.

    x : [B, D_in] float32
    w1: [D_in, H] float32   (transposed relative to torch's [H, D_in])
    b1: [H]       float32
    w2: [H, C]    float32
    b2: [C]       float32
    returns [B, C] float32
    """
    B, D_in = x.shape
    H = w1.shape[1]
    C = w2.shape[1]

    # ---- batch tiling --------------------------------------------------------
    # Number of batch tiles: ceil(B / block_b); for moderately large B force
    # >= 2 (and even) tiles so v7x's two TensorCores both get work under the
    # "parallel" annotation (no-op on v5e/v6e).  Then size the tile to the
    # actual batch so last-tile waste is < 8 rows (no padding B up to a fixed
    # multiple).  Per-tile VMEM (double-buffered x/out + resident weights) is
    # well under every generation's scoped VMEM limit at these sizes.
    grid_b = pl.cdiv(B, block_b)
    if grid_b == 1 and B >= 512:
        grid_b = 2
    if grid_b > 1 and grid_b % 2:
        grid_b += 1
    TB = _round_up(pl.cdiv(B, grid_b), _SUB)
    grid_b = pl.cdiv(B, TB)  # drop any fully-empty trailing tile

    b1_2d = b1.reshape(1, H)
    b2_2d = b2.reshape(1, C)

    cost = pl.CostEstimate(
        flops=2 * B * (D_in * H + H * C),
        transcendentals=0,
        bytes_accessed=4 * (B * D_in + D_in * H + H + H * C + C + B * C),
    )

    return pl.pallas_call(
        dme_kernel,
        out_shape=jax.ShapeDtypeStruct((B, C), jnp.float32),
        grid=(grid_b,),
        in_specs=[
            # x: tiled over batch only; feature dim kept at its true width
            # (block last-dim == full array dim), so the contraction K stays
            # D_in and no padded-x HBM pass is needed.
            pl.BlockSpec((TB, D_in), lambda i: (i, 0)),
            # Weights / biases: same block every step -> fetched once,
            # resident in VMEM across all grid iterations.
            pl.BlockSpec((D_in, H), lambda i: (0, 0)),
            pl.BlockSpec((1, H), lambda i: (0, 0)),
            pl.BlockSpec((H, C), lambda i: (0, 0)),
            pl.BlockSpec((1, C), lambda i: (0, 0)),
        ],
        # Output written at its true width C (the few masked stores for C=8
        # are negligible next to the matmuls); no post-kernel column slice.
        out_specs=pl.BlockSpec((TB, C), lambda i: (i, 0)),
        compiler_params=pltpu.CompilerParams(
            # No cross-iteration carry on the batch axis -> parallel is legal;
            # lets v7x shard the grid across both TensorCores.
            dimension_semantics=("parallel",),
        ),
        cost_estimate=cost,
    )(x, w1, b1_2d, w2, b2_2d)


def reference_forward(x, w1, b1, w2, b2):
    h = jnp.maximum(x @ w1 + b1, 0.0)
    return h @ w2 + b2


if __name__ == "__main__":
    # Small shapes consistent with the module: batch=8, input_size=32,
    # hidden=64 (fixed by the module), num_classes=8.
    B, D_in, H, C = 8, 32, 64, 8

    key = jax.random.PRNGKey(0)
    kx, kw1, kb1, kw2, kb2 = jax.random.split(key, 5)

    x = jax.random.normal(kx, (B, D_in), dtype=jnp.float32)

    # Deterministic parameter init (uniform, PyTorch-Linear-like scale).
    lim1 = 1.0 / jnp.sqrt(D_in)
    w1 = jax.random.uniform(kw1, (D_in, H), minval=-lim1, maxval=lim1,
                            dtype=jnp.float32)
    b1 = jax.random.uniform(kb1, (H,), minval=-lim1, maxval=lim1,
                            dtype=jnp.float32)
    lim2 = 1.0 / jnp.sqrt(H)
    w2 = jax.random.uniform(kw2, (H, C), minval=-lim2, maxval=lim2,
                            dtype=jnp.float32)
    b2 = jax.random.uniform(kb2, (C,), minval=-lim2, maxval=lim2,
                            dtype=jnp.float32)

    # Small-batch check (single full-extent tile, grid of 1).
    out = jax.block_until_ready(dme_forward(x, w1, b1, w2, b2))
    ref = reference_forward(x, w1, b1, w2, b2)
    assert out.shape == (B, C)
    assert jnp.allclose(out, ref, atol=1e-5, rtol=1e-5), "mismatch vs reference (B=8)"

    # Larger-batch check: B=600 -> 2 even tiles of 304 rows, last tile partial
    # (exercises the multi-step grid and Pallas' out-of-bounds row masking).
    B2 = 600
    x2 = jax.random.normal(jax.random.PRNGKey(1), (B2, D_in), dtype=jnp.float32)
    out2 = jax.block_until_ready(dme_forward(x2, w1, b1, w2, b2))
    ref2 = reference_forward(x2, w1, b1, w2, b2)
    assert out2.shape == (B2, C)
    assert jnp.allclose(out2, ref2, atol=1e-5, rtol=1e-5), "mismatch vs reference (B=600)"

    print("KERNEL_OK")
</pallas_src>

<mosaic_0001>
module attributes {stable_mosaic.version = 11 : i64} {
  func.func @dme_kernel(%arg0: i32, %arg1: memref<8x32xf32, #tpu.memory_space<vmem>>, %arg2: memref<32x64xf32, #tpu.memory_space<vmem>>, %arg3: memref<1x64xf32, #tpu.memory_space<vmem>>, %arg4: memref<64x8xf32, #tpu.memory_space<vmem>>, %arg5: memref<1x8xf32, #tpu.memory_space<vmem>>, %arg6: memref<8x8xf32, #tpu.memory_space<vmem>>) attributes {dimension_semantics = [#tpu.dimension_semantics<parallel>], iteration_bounds = array<i64: 1>, scalar_prefetch = 0 : i64, scratch_operands = 0 : i64, tpu.core_type = #tpu.core_type<tc>, window_params = [{transform_indices = @transform_0, window_bounds = array<i64: 8, 32>}, {pipeline_mode = #tpu.pipeline_mode<synchronous>, transform_indices = @transform_1, window_bounds = array<i64: 32, 64>}, {pipeline_mode = #tpu.pipeline_mode<synchronous>, transform_indices = @transform_2, window_bounds = array<i64: 1, 64>}, {pipeline_mode = #tpu.pipeline_mode<synchronous>, transform_indices = @transform_3, window_bounds = array<i64: 64, 8>}, {pipeline_mode = #tpu.pipeline_mode<synchronous>, transform_indices = @transform_4, window_bounds = array<i64: 1, 8>}, {transform_indices = @transform_5, window_bounds = array<i64: 8, 8>}]} {
    %c0 = arith.constant 0 : index
    %c0_0 = arith.constant 0 : index
    %0 = vector.load %arg1[%c0, %c0_0] : memref<8x32xf32, #tpu.memory_space<vmem>>, vector<8x32xf32>
    %c0_1 = arith.constant 0 : index
    %c0_2 = arith.constant 0 : index
    %1 = vector.load %arg2[%c0_1, %c0_2] : memref<32x64xf32, #tpu.memory_space<vmem>>, vector<32x64xf32>
    %cst = arith.constant dense<0.000000e+00> : vector<8x64xf32>
    %2 = tpu.matmul %0, %1, %cst {dimension_numbers = #tpu.dot_dimension_numbers<[1], [0], [0], [1], [0, 0, 1, 1], [], []>} : vector<8x32xf32>, vector<32x64xf32>, vector<8x64xf32> -> vector<8x64xf32>
    %c0_3 = arith.constant 0 : index
    %c0_4 = arith.constant 0 : index
    %3 = vector.load %arg3[%c0_3, %c0_4] : memref<1x64xf32, #tpu.memory_space<vmem>>, vector<1x64xf32>
    %4 = vector.broadcast %3 : vector<1x64xf32> to vector<8x64xf32>
    %5 = arith.addf %2, %4 : vector<8x64xf32>
    %cst_5 = arith.constant 0.000000e+00 : f32
    %6 = vector.broadcast %cst_5 : f32 to vector<8x64xf32>
    %7 = arith.maximumf %5, %6 : vector<8x64xf32>
    %c0_6 = arith.constant 0 : index
    %c0_7 = arith.constant 0 : index
    %8 = vector.load %arg4[%c0_6, %c0_7] : memref<64x8xf32, #tpu.memory_space<vmem>>, vector<64x8xf32>
    %cst_8 = arith.constant dense<0.000000e+00> : vector<8x8xf32>
    %9 = tpu.matmul %7, %8, %cst_8 {dimension_numbers = #tpu.dot_dimension_numbers<[1], [0], [0], [1], [0, 0, 1, 1], [], []>} : vector<8x64xf32>, vector<64x8xf32>, vector<8x8xf32> -> vector<8x8xf32>
    %c0_9 = arith.constant 0 : index
    %c0_10 = arith.constant 0 : index
    %10 = vector.load %arg5[%c0_9, %c0_10] : memref<1x8xf32, #tpu.memory_space<vmem>>, vector<1x8xf32>
    %11 = vector.broadcast %10 : vector<1x8xf32> to vector<8x8xf32>
    %12 = arith.addf %9, %11 : vector<8x8xf32>
    %c0_11 = arith.constant 0 : index
    %c0_12 = arith.constant 0 : index
    %13 = vector.load %arg6[%c0_11, %c0_12] : memref<8x8xf32, #tpu.memory_space<vmem>>, vector<8x8xf32>
    tpu.vector_store %arg6[%c0_11, %c0_12], %12 {strides = array<i32>} : memref<8x8xf32, #tpu.memory_space<vmem>>, vector<8x8xf32>,
    return
  }
  func.func @transform_0(%arg0: i32) -> (i32, i32) {
    %c0_i32 = arith.constant 0 : i32
    %c0_i32_0 = arith.constant 0 : i32
    return %arg0, %c0_i32 : i32, i32
  }
  func.func @transform_1(%arg0: i32) -> (i32, i32) {
    %c0_i32 = arith.constant 0 : i32
    %c0_i32_0 = arith.constant 0 : i32
    %c0_i32_1 = arith.constant 0 : i32
    return %c0_i32, %c0_i32_0 : i32, i32
  }
  func.func @transform_2(%arg0: i32) -> (i32, i32) {
    %c0_i32 = arith.constant 0 : i32
    %c0_i32_0 = arith.constant 0 : i32
    %c0_i32_1 = arith.constant 0 : i32
    return %c0_i32, %c0_i32_0 : i32, i32
  }
  func.func @transform_3(%arg0: i32) -> (i32, i32) {
    %c0_i32 = arith.constant 0 : i32
    %c0_i32_0 = arith.constant 0 : i32
    %c0_i32_1 = arith.constant 0 : i32
    return %c0_i32, %c0_i32_0 : i32, i32
  }
  func.func @transform_4(%arg0: i32) -> (i32, i32) {
    %c0_i32 = arith.constant 0 : i32
    %c0_i32_0 = arith.constant 0 : i32
    %c0_i32_1 = arith.constant 0 : i32
    return %c0_i32, %c0_i32_0 : i32, i32
  }
  func.func @transform_5(%arg0: i32) -> (i32, i32) {
    %c0_i32 = arith.constant 0 : i32
    %c0_i32_0 = arith.constant 0 : i32
    return %arg0, %c0_i32 : i32, i32
  }
}

</mosaic_0001>

<llo_original>
// kernel: tpu_custom_call.1
$region0: #{tpu_custom_call.1}
  #allocation0 [shape = 'u32[]', space=smem, size = 0x4, offset = 0x4, fixed_abs, tag = 'smem constant byte address 0x4 - core index']
  #allocation1 [shape = 'u32[72,128]{1,0:T(1,128)}', space=vmem, size = 0x9000, scoped, tag = 'internal scratch']
  %s0 = inlined_call_operand.vmem [shape: f32[8,32], index: 0, kind: input, shape index: {}]
  %s1 = inlined_call_operand.vmem [shape: f32[32,64], index: 1, kind: input, shape index: {}]
  %s2 = inlined_call_operand.vmem [shape: f32[1,64], index: 2, kind: input, shape index: {}]
  %s3 = inlined_call_operand.vmem [shape: f32[64,8], index: 3, kind: input, shape index: {}]
  %s4 = inlined_call_operand.vmem [shape: f32[1,8], index: 4, kind: input, shape index: {}]
  %s5 = inlined_call_operand.hbm [shape: f32[8,8], index: 5, kind: output, shape index: {}]
  %s6 = sld [smem:[#allocation0]]
  $region30: #{tpu_custom_call.1} parent=0
    _
  %s8 = ssub.s32 1, %s6
  %s9 = scalar_select 0, %s8, %s6
  $region1: #{tpu_custom_call.1} parent=0
    #allocation2 [shape = 'u8[4096]{0}', space=vmem, size = 0x1000, scoped, tag = 'output window, operand 0, single buffered']
    #allocation3 [shape = 's32[1]{0}', space=sflag, size = 0x4, scoped, tag = 'scoped memory for tpu_custom_call.1']
    %10 = vsyncpa [#allocation3], 0
    // Predicated region
    $region2: #{tpu_custom_call.1} parent=1 // pred_check
      _
    $region3: #{tpu_custom_call.1} parent=1 // pred_check_branch
      %12 = sbr.rel (0) target = $region5
    $region4: #{tpu_custom_call.1} parent=1 // pred_region
      _
    $region5: #{tpu_custom_call.1} parent=1 // pred_fallthru
      _
    // Predicated region
    $region6: #{tpu_custom_call.1} parent=1 // pred_check
      _
    $region7: #{tpu_custom_call.1} parent=1 // pred_check_branch
      %14 = sbr.rel (0) target = $region9
    $region8: #{tpu_custom_call.1} parent=1 // pred_region
      _
    $region9: #{tpu_custom_call.1} parent=1 // pred_fallthru
      _
    // Predicated region
    $region10: #{tpu_custom_call.1} parent=1 // pred_check
      _
    $region11: #{tpu_custom_call.1} parent=1 // pred_check_branch
      %16 = sbr.rel (0) target = $region13
    $region12: #{tpu_custom_call.1} parent=1 // pred_region
      _
    $region13: #{tpu_custom_call.1} parent=1 // pred_fallthru
      _
    // Predicated region
    $region14: #{tpu_custom_call.1} parent=1 // pred_check
      _
    $region15: #{tpu_custom_call.1} parent=1 // pred_check_branch
      %18 = sbr.rel (0) target = $region17
    $region16: #{tpu_custom_call.1} parent=1 // pred_region
      _
    $region17: #{tpu_custom_call.1} parent=1 // pred_fallthru
      _
    // Predicated region
    $region18: #{tpu_custom_call.1} parent=1 // pred_check
      _
    $region19: #{tpu_custom_call.1} parent=1 // pred_check_branch
      %20 = sbr.rel (0) target = $region21
    $region20: #{tpu_custom_call.1} parent=1 // pred_region
      _
    $region21: #{tpu_custom_call.1} parent=1 // pred_fallthru
      _
    %v21 = vld [vmem:[%s0] sm:$0xff]
    %v22 = vld [vmem:[%s1] sm:$0xff]
    %v23 = vld [vmem:[%s1 + $0x8] sm:$0xff]
    %v24 = vld [vmem:[%s1 + $0x10] sm:$0xff]
    %v25 = vld [vmem:[%s1 + $0x18] sm:$0xff]
    %v26 = vld [vmem:[%s2] sm:$0x1]
    %v28 = vperm.slane %v26, 0
    %vm30 = vcmask 261120
    %v32 = vsel %vm30, %v21, 0
    %34 = vmatpush.msra.mxu0 0.0
    %35 = vmatpush.msra.mxu0 0.0
    %36 = vmatpush.msra.mxu0 0.0
    %37 = vmatpush.msra.mxu0 0.0
    %38 = vmatpush.msra.mxu0 0.0
    %39 = vmatpush.msra.mxu0 0.0
    %40 = vmatpush.msra.mxu0 0.0
    %41 = vmatpush.msra.mxu0 0.0
    %42 = vmatpush.msra.mxu0 0.0
    %43 = vmatpush.msra.mxu0 0.0
    %44 = vmatpush.msra.mxu0 0.0
    %45 = vmatpush.msra.mxu0 0.0
    %46 = vmatpush.msra.mxu0 %v25
    %47 = vmatpush.msra.mxu0 %v24
    %48 = vmatpush.msra.mxu0 %v23
    %49 = vmatpush.msra.mxu0 %v22
    %50 = vmatmul.f32.gmra.mxu0 %v32
    %v51 = vpop.f32.mrf.mxu0
    %v52 = vadd.f32 %v28, %v51
    %53 = vdwg.mxu0
    %v54 = vmax.f32 %v52, 0.0
    %v55 = vld [vmem:[%s3] sm:$0xff]
    %v56 = vld [vmem:[%s3 + $0x8] sm:$0xff]
    %v57 = vld [vmem:[%s3 + $0x10] sm:$0xff]
    %v58 = vld [vmem:[%s3 + $0x18] sm:$0xff]
    %v59 = vld [vmem:[%s3 + $0x20] sm:$0xff]
    %v60 = vld [vmem:[%s3 + $0x28] sm:$0xff]
    %v61 = vld [vmem:[%s3 + $0x30] sm:$0xff]
    %v62 = vld [vmem:[%s3 + $0x38] sm:$0xff]
    %v63 = vld [vmem:[%s4] sm:$0x1]
    %v65 = vperm.slane %v63, 0
    %vm67 = vcmask 523264
    %v69 = vsel %vm67, %v54, 0
    %71 = vmatpush.msra.mxu0 0.0
    %72 = vmatpush.msra.mxu0 0.0
    %73 = vmatpush.msra.mxu0 0.0
    %74 = vmatpush.msra.mxu0 0.0
    %75 = vmatpush.msra.mxu0 0.0
    %76 = vmatpush.msra.mxu0 0.0
    %77 = vmatpush.msra.mxu0 0.0
    %78 = vmatpush.msra.mxu0 0.0
    %79 = vmatpush.msra.mxu0 %v62
    %80 = vmatpush.msra.mxu0 %v61
    %81 = vmatpush.msra.mxu0 %v60
    %82 = vmatpush.msra.mxu0 %v59
    %83 = vmatpush.msra.mxu0 %v58
    %84 = vmatpush.msra.mxu0 %v57
    %85 = vmatpush.msra.mxu0 %v56
    %86 = vmatpush.msra.mxu0 %v55
    %87 = vmatmul.f32.gmra.mxu0 %v69
    %v88 = vpop.f32.mrf.mxu0
    %v89 = vadd.f32 %v65, %v88
    %90 = vdwg.mxu0
    %vm91 = vcmask 64512
    %92 = vst.msk [vmem:[#allocation2] sm:$0xff] %vm91, %v89
    // Predicated region
    $region22: #{tpu_custom_call.1} parent=1 // pred_check
      _
    $region23: #{tpu_custom_call.1} parent=1 // pred_check_branch
      %94 = sbr.rel (0) target = $region25
    $region24: #{tpu_custom_call.1} parent=1 // pred_region
      %96 = vsyncadd [#allocation3], 0
      %s98 = sshll.u32 [#allocation2], 4
      %s99 = int_to_ptr.vmem [resolvable:$true] %s98
      %s100 = sshll.u32 %s5, 4
      %s101 = int_to_ptr.hbm [resolvable:$true] %s100
      %103 = dma.vmem_to_hbm [thread:$0]  %s99, 128, %s101, [#allocation3]
    $region25: #{tpu_custom_call.1} parent=1 // pred_fallthru
      _
    // Predicated region
    $region26: #{tpu_custom_call.1} parent=1 // pred_check
      _
    $region27: #{tpu_custom_call.1} parent=1 // pred_check_branch
      %105 = sbr.rel (0) target = $region29
    $region28: #{tpu_custom_call.1} parent=1 // pred_region
      %107 = dma.done [#allocation3], 128
    $region29: #{tpu_custom_call.1} parent=1 // pred_fallthru
      _
    %108 = vsyncpa [#allocation3], 1

</llo_original>
